<compile_context>
chip_gen: v5e
topology: v5e:2x2
jax: 0.10.0
libtpu: 0.0.40
codegen_flags: <defaults>
</compile_context>

<pallas_src>
import functools

import jax
import jax.numpy as jnp
from jax.experimental import pallas as pl
from jax.experimental.pallas import tpu as pltpu

_BN_EPS = 1e-5
_LANE = 128


def _round_up(n, m=_LANE):
    return ((n + m - 1) // m) * m


def _fused_mlp_kernel(num_hidden, has_out, *refs):
    """refs = [x, (w_i, gamma_i, beta_i) * num_hidden, (w_out, b_out)?, o]."""
    x_ref = refs[0]
    o_ref = refs[-1]

    # f32 from HBM -> bf16 once, in-kernel.
    h = x_ref[...].astype(jnp.bfloat16)
    pos = 1
    for _ in range(num_hidden):
        w_ref, gamma_ref, beta_ref = refs[pos], refs[pos + 1], refs[pos + 2]
        pos += 3

        # Linear (hidden bias omitted: exactly cancelled by BN mean subtraction).
        y = jnp.dot(h, w_ref[...], preferred_element_type=jnp.float32)

        # BatchNorm1d, training-mode biased batch stats, two-pass variance on
        # the resident f32 tile (robust, one extra VPU pass hidden under MXU).
        inv_b = 1.0 / y.shape[0]
        mean = jnp.sum(y, axis=0, keepdims=True) * inv_b
        centered = y - mean
        var = jnp.sum(centered * centered, axis=0, keepdims=True) * inv_b
        scale = gamma_ref[...] * jax.lax.rsqrt(var + _BN_EPS)

        # Affine + ReLU, back to bf16 for the next MXU pass.
        h = jnp.maximum(centered * scale + beta_ref[...], 0.0).astype(jnp.bfloat16)

    if has_out:
        w_ref, b_ref = refs[pos], refs[pos + 1]
        y = jnp.dot(h, w_ref[...], preferred_element_type=jnp.float32)
        o_ref[...] = (y + b_ref[...]).astype(o_ref.dtype)   # lane-dense store
    else:
        o_ref[...] = h.astype(o_ref.dtype)


def init_mlp_params(key, input_dim, embed_dims, output_dim=1):
    """Deterministic f32 parameter init mirroring the PyTorch module's shapes."""
    params = {"hidden": [], "out": None}
    d_in = input_dim
    for d_out in embed_dims:
        key, k_w, k_b = jax.random.split(key, 3)
        # nn.Linear default init: U(-1/sqrt(fan_in), 1/sqrt(fan_in))
        bound = 1.0 / jnp.sqrt(jnp.float32(d_in))
        w = jax.random.uniform(k_w, (d_in, d_out), jnp.float32, -bound, bound)
        b = jax.random.uniform(k_b, (1, d_out), jnp.float32, -bound, bound)
        gamma = jnp.ones((1, d_out), jnp.float32)   # BatchNorm1d weight
        beta = jnp.zeros((1, d_out), jnp.float32)   # BatchNorm1d bias
        params["hidden"].append((w, b, gamma, beta))
        d_in = d_out
    if output_dim is not None:
        key, k_w, k_b = jax.random.split(key, 3)
        bound = 1.0 / jnp.sqrt(jnp.float32(d_in))
        w = jax.random.uniform(k_w, (d_in, output_dim), jnp.float32, -bound, bound)
        b = jax.random.uniform(k_b, (1, output_dim), jnp.float32, -bound, bound)
        params["out"] = (w, b)
    return params


def prepare_fused_params(params):
    """One-time (outside jit) conversion to kernel layout:
    bf16 weights, feature dims zero-padded to 128-lane multiples.
    Padded gamma/beta/bias columns are zero, so padded features stay exactly 0."""
    prep = {"hidden": [], "out": None}
    for (w, _b, gamma, beta) in params["hidden"]:
        d_in, d_out = w.shape
        p_in, p_out = _round_up(d_in), _round_up(d_out)
        w_p = (jnp.zeros((p_in, p_out), jnp.bfloat16)
               .at[:d_in, :d_out].set(w.astype(jnp.bfloat16)))
        g_p = jnp.zeros((1, p_out), jnp.float32).at[:, :d_out].set(gamma)
        b_p = jnp.zeros((1, p_out), jnp.float32).at[:, :d_out].set(beta)
        prep["hidden"].append((w_p, g_p, b_p))
    if params["out"] is not None:
        w, b = params["out"]
        d_in, d_out = w.shape
        p_in, p_out = _round_up(d_in), _round_up(d_out)
        w_p = (jnp.zeros((p_in, p_out), jnp.bfloat16)
               .at[:d_in, :d_out].set(w.astype(jnp.bfloat16)))
        b_p = jnp.zeros((1, p_out), jnp.float32).at[:, :d_out].set(b)
        prep["out"] = (w_p, b_p)
    return prep


def mlp_forward_fused(x, prep):
    """Single fused pallas_call over 128-padded feature dims."""
    hidden = prep["hidden"]
    num_hidden = len(hidden)
    has_out = prep["out"] is not None

    B = x.shape[0]
    first_w = hidden[0][0] if num_hidden else prep["out"][0]
    d_in_p = first_w.shape[0]
    if x.shape[1] != d_in_p:
        # Zero-pad input features (padded weight rows are zero anyway).
        # NOTE: never pad the batch axis - it would corrupt BN batch stats.
        x = jnp.pad(x, ((0, 0), (0, d_in_p - x.shape[1])))

    inputs = [x]
    flops = 0
    transcendentals = 0
    d_prev = d_in_p
    for (w, g, b) in hidden:
        inputs += [w, g, b]
        d_out = w.shape[1]
        flops += 2 * B * d_prev * d_out + 10 * B * d_out   # matmul + BN/ReLU
        transcendentals += d_out                           # rsqrt per feature
        d_prev = d_out
    if has_out:
        w, b = prep["out"]
        inputs += [w, b]
        d_out = w.shape[1]
        flops += 2 * B * d_prev * d_out + B * d_out
        d_prev = d_out
    out_dim_p = d_prev

    out_shape = jax.ShapeDtypeStruct((B, out_dim_p), jnp.float32)
    bytes_accessed = sum(int(a.size) * a.dtype.itemsize for a in inputs)
    bytes_accessed += B * out_dim_p * 4

    vmem = pl.BlockSpec(memory_space=pltpu.MemorySpace.VMEM)
    kernel = functools.partial(_fused_mlp_kernel, num_hidden, has_out)
    return pl.pallas_call(
        kernel,
        out_shape=out_shape,
        in_specs=[vmem] * len(inputs),
        out_specs=vmem,
        cost_estimate=pl.CostEstimate(
            flops=int(flops),
            transcendentals=int(transcendentals),
            bytes_accessed=int(bytes_accessed),
        ),
    )(*inputs)


@functools.partial(jax.jit, static_argnames=("output_dim",))
def mlp_forward(x, prep, *, output_dim):
    out_padded = mlp_forward_fused(x, prep)
    return out_padded[:, :output_dim]


def mlp_reference(x, params):
    """Pure-JAX f32 reference with exact PyTorch forward semantics
    (Linear bias included, BN training-mode biased batch var)."""
    h = x
    for (w, b, gamma, beta) in params["hidden"]:
        y = h @ w + b
        mean = jnp.mean(y, axis=0, keepdims=True)
        var = jnp.mean((y - mean) ** 2, axis=0, keepdims=True)
        y = (y - mean) / jnp.sqrt(var + _BN_EPS) * gamma + beta
        h = jnp.maximum(y, 0.0)
    if params["out"] is not None:
        w, b = params["out"]
        h = h @ w + b
    return h


if __name__ == "__main__":
    key = jax.random.PRNGKey(0)
    batch, input_dim = 8, 16
    embed_dims = (32, 64)
    output_dim = 1

    key, k_x, k_p = jax.random.split(key, 3)
    x = jax.random.normal(k_x, (batch, input_dim), jnp.float32)
    params = init_mlp_params(k_p, input_dim, embed_dims, output_dim)
    prep = prepare_fused_params(params)   # one-time: pad to 128 lanes + bf16

    out = jax.block_until_ready(mlp_forward(x, prep, output_dim=output_dim))
    ref = mlp_reference(x, params)

    assert out.shape == (batch, output_dim), out.shape
    # Tolerance covers bf16 rounding of the MXU operands (accumulation is f32).
    assert jnp.allclose(out, ref, atol=5e-2, rtol=5e-2), (out, ref)

    print("KERNEL_OK")
</pallas_src>

<mosaic_0001>
module attributes {stable_mosaic.version = 11 : i64} {
  func.func @_fused_mlp_kernel(%arg0: memref<8x128xf32, #tpu.memory_space<vmem>>, %arg1: memref<128x128xbf16, #tpu.memory_space<vmem>>, %arg2: memref<1x128xf32, #tpu.memory_space<vmem>>, %arg3: memref<1x128xf32, #tpu.memory_space<vmem>>, %arg4: memref<128x128xbf16, #tpu.memory_space<vmem>>, %arg5: memref<1x128xf32, #tpu.memory_space<vmem>>, %arg6: memref<1x128xf32, #tpu.memory_space<vmem>>, %arg7: memref<128x128xbf16, #tpu.memory_space<vmem>>, %arg8: memref<1x128xf32, #tpu.memory_space<vmem>>, %arg9: memref<8x128xf32, #tpu.memory_space<vmem>>) attributes {dimension_semantics = [], scalar_prefetch = 0 : i64, scratch_operands = 0 : i64, tpu.core_type = #tpu.core_type<tc>} {
    %c0 = arith.constant 0 : index
    %c0_0 = arith.constant 0 : index
    %0 = vector.load %arg0[%c0, %c0_0] : memref<8x128xf32, #tpu.memory_space<vmem>>, vector<8x128xf32>
    %1 = arith.truncf %0 : vector<8x128xf32> to vector<8x128xbf16>
    %c0_1 = arith.constant 0 : index
    %c0_2 = arith.constant 0 : index
    %2 = vector.load %arg1[%c0_1, %c0_2] : memref<128x128xbf16, #tpu.memory_space<vmem>>, vector<128x128xbf16>
    %cst = arith.constant dense<0.000000e+00> : vector<8x128xf32>
    %3 = tpu.matmul %1, %2, %cst {dimension_numbers = #tpu.dot_dimension_numbers<[1], [0], [0], [1], [0, 0, 1, 1], [], []>} : vector<8x128xbf16>, vector<128x128xbf16>, vector<8x128xf32> -> vector<8x128xf32>
    %cst_3 = arith.constant dense<0.000000e+00> : vector<128xf32>
    %4 = vector.multi_reduction <add>, %3, %cst_3 [0] : vector<8x128xf32> to vector<128xf32>
    %5 = vector.shape_cast %4 : vector<128xf32> to vector<1x128xf32>
    %cst_4 = arith.constant 1.250000e-01 : f32
    %6 = vector.broadcast %cst_4 : f32 to vector<1x128xf32>
    %7 = arith.mulf %5, %6 : vector<1x128xf32>
    %8 = vector.broadcast %7 : vector<1x128xf32> to vector<8x128xf32>
    %9 = arith.subf %3, %8 : vector<8x128xf32>
    %10 = arith.mulf %9, %9 : vector<8x128xf32>
    %cst_5 = arith.constant dense<0.000000e+00> : vector<128xf32>
    %11 = vector.multi_reduction <add>, %10, %cst_5 [0] : vector<8x128xf32> to vector<128xf32>
    %12 = vector.shape_cast %11 : vector<128xf32> to vector<1x128xf32>
    %cst_6 = arith.constant 1.250000e-01 : f32
    %13 = vector.broadcast %cst_6 : f32 to vector<1x128xf32>
    %14 = arith.mulf %12, %13 : vector<1x128xf32>
    %c0_7 = arith.constant 0 : index
    %c0_8 = arith.constant 0 : index
    %15 = vector.load %arg2[%c0_7, %c0_8] : memref<1x128xf32, #tpu.memory_space<vmem>>, vector<1x128xf32>
    %cst_9 = arith.constant 9.99999974E-6 : f32
    %16 = vector.broadcast %cst_9 : f32 to vector<1x128xf32>
    %17 = arith.addf %14, %16 : vector<1x128xf32>
    %18 = math.rsqrt %17 : vector<1x128xf32>
    %19 = arith.mulf %15, %18 : vector<1x128xf32>
    %20 = vector.broadcast %19 : vector<1x128xf32> to vector<8x128xf32>
    %21 = arith.mulf %9, %20 : vector<8x128xf32>
    %c0_10 = arith.constant 0 : index
    %c0_11 = arith.constant 0 : index
    %22 = vector.load %arg3[%c0_10, %c0_11] : memref<1x128xf32, #tpu.memory_space<vmem>>, vector<1x128xf32>
    %23 = vector.broadcast %22 : vector<1x128xf32> to vector<8x128xf32>
    %24 = arith.addf %21, %23 : vector<8x128xf32>
    %cst_12 = arith.constant 0.000000e+00 : f32
    %25 = vector.broadcast %cst_12 : f32 to vector<8x128xf32>
    %26 = arith.maximumf %24, %25 : vector<8x128xf32>
    %27 = arith.truncf %26 : vector<8x128xf32> to vector<8x128xbf16>
    %c0_13 = arith.constant 0 : index
    %c0_14 = arith.constant 0 : index
    %28 = vector.load %arg4[%c0_13, %c0_14] : memref<128x128xbf16, #tpu.memory_space<vmem>>, vector<128x128xbf16>
    %cst_15 = arith.constant dense<0.000000e+00> : vector<8x128xf32>
    %29 = tpu.matmul %27, %28, %cst_15 {dimension_numbers = #tpu.dot_dimension_numbers<[1], [0], [0], [1], [0, 0, 1, 1], [], []>} : vector<8x128xbf16>, vector<128x128xbf16>, vector<8x128xf32> -> vector<8x128xf32>
    %cst_16 = arith.constant dense<0.000000e+00> : vector<128xf32>
    %30 = vector.multi_reduction <add>, %29, %cst_16 [0] : vector<8x128xf32> to vector<128xf32>
    %31 = vector.shape_cast %30 : vector<128xf32> to vector<1x128xf32>
    %cst_17 = arith.constant 1.250000e-01 : f32
    %32 = vector.broadcast %cst_17 : f32 to vector<1x128xf32>
    %33 = arith.mulf %31, %32 : vector<1x128xf32>
    %34 = vector.broadcast %33 : vector<1x128xf32> to vector<8x128xf32>
    %35 = arith.subf %29, %34 : vector<8x128xf32>
    %36 = arith.mulf %35, %35 : vector<8x128xf32>
    %cst_18 = arith.constant dense<0.000000e+00> : vector<128xf32>
    %37 = vector.multi_reduction <add>, %36, %cst_18 [0] : vector<8x128xf32> to vector<128xf32>
    %38 = vector.shape_cast %37 : vector<128xf32> to vector<1x128xf32>
    %cst_19 = arith.constant 1.250000e-01 : f32
    %39 = vector.broadcast %cst_19 : f32 to vector<1x128xf32>
    %40 = arith.mulf %38, %39 : vector<1x128xf32>
    %c0_20 = arith.constant 0 : index
    %c0_21 = arith.constant 0 : index
    %41 = vector.load %arg5[%c0_20, %c0_21] : memref<1x128xf32, #tpu.memory_space<vmem>>, vector<1x128xf32>
    %cst_22 = arith.constant 9.99999974E-6 : f32
    %42 = vector.broadcast %cst_22 : f32 to vector<1x128xf32>
    %43 = arith.addf %40, %42 : vector<1x128xf32>
    %44 = math.rsqrt %43 : vector<1x128xf32>
    %45 = arith.mulf %41, %44 : vector<1x128xf32>
    %46 = vector.broadcast %45 : vector<1x128xf32> to vector<8x128xf32>
    %47 = arith.mulf %35, %46 : vector<8x128xf32>
    %c0_23 = arith.constant 0 : index
    %c0_24 = arith.constant 0 : index
    %48 = vector.load %arg6[%c0_23, %c0_24] : memref<1x128xf32, #tpu.memory_space<vmem>>, vector<1x128xf32>
    %49 = vector.broadcast %48 : vector<1x128xf32> to vector<8x128xf32>
    %50 = arith.addf %47, %49 : vector<8x128xf32>
    %cst_25 = arith.constant 0.000000e+00 : f32
    %51 = vector.broadcast %cst_25 : f32 to vector<8x128xf32>
    %52 = arith.maximumf %50, %51 : vector<8x128xf32>
    %53 = arith.truncf %52 : vector<8x128xf32> to vector<8x128xbf16>
    %c0_26 = arith.constant 0 : index
    %c0_27 = arith.constant 0 : index
    %54 = vector.load %arg7[%c0_26, %c0_27] : memref<128x128xbf16, #tpu.memory_space<vmem>>, vector<128x128xbf16>
    %cst_28 = arith.constant dense<0.000000e+00> : vector<8x128xf32>
    %55 = tpu.matmul %53, %54, %cst_28 {dimension_numbers = #tpu.dot_dimension_numbers<[1], [0], [0], [1], [0, 0, 1, 1], [], []>} : vector<8x128xbf16>, vector<128x128xbf16>, vector<8x128xf32> -> vector<8x128xf32>
    %c0_29 = arith.constant 0 : index
    %c0_30 = arith.constant 0 : index
    %56 = vector.load %arg8[%c0_29, %c0_30] : memref<1x128xf32, #tpu.memory_space<vmem>>, vector<1x128xf32>
    %57 = vector.broadcast %56 : vector<1x128xf32> to vector<8x128xf32>
    %58 = arith.addf %55, %57 : vector<8x128xf32>
    %c0_31 = arith.constant 0 : index
    %c0_32 = arith.constant 0 : index
    %59 = vector.load %arg9[%c0_31, %c0_32] : memref<8x128xf32, #tpu.memory_space<vmem>>, vector<8x128xf32>
    tpu.vector_store %arg9[%c0_31, %c0_32], %58 {strides = array<i32>} : memref<8x128xf32, #tpu.memory_space<vmem>>, vector<8x128xf32>,
    return
  }
}

</mosaic_0001>

<llo_original>
// kernel: mlp_forward.1
$region0: #{mlp_forward.1}
  #allocation0 [shape = 'u32[]', space=smem, size = 0x4, offset = 0x4, fixed_abs, tag = 'smem constant byte address 0x4 - core index']
  #allocation1 [shape = 'u32[72,128]{1,0:T(1,128)}', space=vmem, size = 0x9000, scoped, tag = 'internal scratch']
  %s0 = inlined_call_operand.vmem [shape: f32[8,128], index: 0, kind: input, shape index: {}]
  %s1 = inlined_call_operand.hbm [shape: bf16[128,128], index: 1, kind: input, shape index: {}]
  %s2 = inlined_call_operand.vmem [shape: f32[1,128], index: 2, kind: input, shape index: {}]
  %s3 = inlined_call_operand.vmem [shape: f32[1,128], index: 3, kind: input, shape index: {}]
  %s4 = inlined_call_operand.hbm [shape: bf16[128,128], index: 4, kind: input, shape index: {}]
  %s5 = inlined_call_operand.vmem [shape: f32[1,128], index: 5, kind: input, shape index: {}]
  %s6 = inlined_call_operand.vmem [shape: f32[1,128], index: 6, kind: input, shape index: {}]
  %s7 = inlined_call_operand.hbm [shape: bf16[128,128], index: 7, kind: input, shape index: {}]
  %s8 = inlined_call_operand.vmem [shape: f32[1,128], index: 8, kind: input, shape index: {}]
  %s9 = inlined_call_operand.vmem [shape: f32[8,128], index: 9, kind: output, shape index: {}]
  %s10 = sld [smem:[#allocation0]]
  $region58: #{mlp_forward.1} parent=0
    _
  %s12 = ssub.s32 1, %s10
  %s13 = scalar_select 0, %s12, %s10
  $region1: #{mlp_forward.1} parent=0
    #allocation2 [shape = 'u8[32768]{0}', space=vmem, size = 0x8000, scoped, tag = 'input window, operand 1, single buffered']
    #allocation3 [shape = 's32[1]{0}', space=sflag, size = 0x4, scoped, tag = 'scoped memory for mlp_forward.1']
    #allocation4 [shape = 'u8[32768]{0}', space=vmem, size = 0x8000, scoped, tag = 'input window, operand 4, single buffered']
    #allocation5 [shape = 's32[1]{0}', space=sflag, size = 0x4, scoped, tag = 'scoped memory for mlp_forward.1']
    #allocation6 [shape = 'u8[32768]{0}', space=vmem, size = 0x8000, scoped, tag = 'input window, operand 7, single buffered']
    %14 = vsyncpa [#allocation3], 0
    %15 = vsyncpa [#allocation5], 0
    // Predicated region
    $region2: #{mlp_forward.1} parent=1 // pred_check
      _
    $region3: #{mlp_forward.1} parent=1 // pred_check_branch
      %17 = sbr.rel (0) target = $region5
    $region4: #{mlp_forward.1} parent=1 // pred_region
      _
    $region5: #{mlp_forward.1} parent=1 // pred_fallthru
      _
    // Predicated region
    $region6: #{mlp_forward.1} parent=1 // pred_check
      _
    $region7: #{mlp_forward.1} parent=1 // pred_check_branch
      %19 = sbr.rel (0) target = $region9
    $region8: #{mlp_forward.1} parent=1 // pred_region
      %21 = vsyncadd [#allocation3], 0
      %s22 = sshll.u32 %s1, 4
      %s23 = int_to_ptr.hbm [resolvable:$true] %s22
      %s24 = sshll.u32 [#allocation2], 4
      %s25 = int_to_ptr.vmem [resolvable:$true] %s24
      %30 = dma.hbm_to_vmem [thread:$0]  %s23, 1024, %s25, [#allocation3], 64, 64, 4
    $region9: #{mlp_forward.1} parent=1 // pred_fallthru
      _
    // Predicated region
    $region10: #{mlp_forward.1} parent=1 // pred_check
      _
    $region11: #{mlp_forward.1} parent=1 // pred_check_branch
      %32 = sbr.rel (0) target = $region13
    $region12: #{mlp_forward.1} parent=1 // pred_region
      _
    $region13: #{mlp_forward.1} parent=1 // pred_fallthru
      _
    // Predicated region
    $region14: #{mlp_forward.1} parent=1 // pred_check
      _
    $region15: #{mlp_forward.1} parent=1 // pred_check_branch
      %34 = sbr.rel (0) target = $region17
    $region16: #{mlp_forward.1} parent=1 // pred_region
      _
    $region17: #{mlp_forward.1} parent=1 // pred_fallthru
      _
    // Predicated region
    $region18: #{mlp_forward.1} parent=1 // pred_check
      _
    $region19: #{mlp_forward.1} parent=1 // pred_check_branch
      %36 = sbr.rel (0) target = $region21
    $region20: #{mlp_forward.1} parent=1 // pred_region
      %38 = vsyncadd [#allocation5], 0
      %s39 = sshll.u32 %s4, 4
      %s40 = int_to_ptr.hbm [resolvable:$true] %s39
      %s41 = sshll.u32 [#allocation4], 4
      %s42 = int_to_ptr.vmem [resolvable:$true] %s41
      %47 = dma.hbm_to_vmem [thread:$0]  %s40, 1024, %s42, [#allocation5], 64, 64, 4
    $region21: #{mlp_forward.1} parent=1 // pred_fallthru
      _
    // Predicated region
    $region22: #{mlp_forward.1} parent=1 // pred_check
      _
    $region23: #{mlp_forward.1} parent=1 // pred_check_branch
      %49 = sbr.rel (0) target = $region25
    $region24: #{mlp_forward.1} parent=1 // pred_region
      _
    $region25: #{mlp_forward.1} parent=1 // pred_fallthru
      _
    // Predicated region
    $region26: #{mlp_forward.1} parent=1 // pred_check
      _
    $region27: #{mlp_forward.1} parent=1 // pred_check_branch
      %51 = sbr.rel (0) target = $region29
    $region28: #{mlp_forward.1} parent=1 // pred_region
      _
    $region29: #{mlp_forward.1} parent=1 // pred_fallthru
      _
    // Predicated region
    $region30: #{mlp_forward.1} parent=1 // pred_check
      _
    $region31: #{mlp_forward.1} parent=1 // pred_check_branch
      %53 = sbr.rel (0) target = $region33
    $region32: #{mlp_forward.1} parent=1 // pred_region
      %55 = vsyncadd [#allocation5], 0
      %s56 = sshll.u32 %s7, 4
      %s57 = int_to_ptr.hbm [resolvable:$true] %s56
      %s58 = sshll.u32 [#allocation6], 4
      %s59 = int_to_ptr.vmem [resolvable:$true] %s58
      %64 = dma.hbm_to_vmem [thread:$0]  %s57, 1024, %s59, [#allocation5], 64, 64, 4
    $region33: #{mlp_forward.1} parent=1 // pred_fallthru
      _
    // Predicated region
    $region34: #{mlp_forward.1} parent=1 // pred_check
      _
    $region35: #{mlp_forward.1} parent=1 // pred_check_branch
      %66 = sbr.rel (0) target = $region37
    $region36: #{mlp_forward.1} parent=1 // pred_region
      _
    $region37: #{mlp_forward.1} parent=1 // pred_fallthru
      _
    // Predicated region
    $region38: #{mlp_forward.1} parent=1 // pred_check
      _
    $region39: #{mlp_forward.1} parent=1 // pred_check_branch
      %68 = sbr.rel (0) target = $region41
    $region40: #{mlp_forward.1} parent=1 // pred_region
      %70 = dma.done [#allocation3], 1024
    $region41: #{mlp_forward.1} parent=1 // pred_fallthru
      _
    // Predicated region
    $region42: #{mlp_forward.1} parent=1 // pred_check
      _
    $region43: #{mlp_forward.1} parent=1 // pred_check_branch
      %72 = sbr.rel (0) target = $region45
    $region44: #{mlp_forward.1} parent=1 // pred_region
      %74 = dma.done [#allocation5], 1024
    $region45: #{mlp_forward.1} parent=1 // pred_fallthru
      _
    // Predicated region
    $region46: #{mlp_forward.1} parent=1 // pred_check
      _
    $region47: #{mlp_forward.1} parent=1 // pred_check_branch
      %76 = sbr.rel (0) target = $region49
    $region48: #{mlp_forward.1} parent=1 // pred_region
      %78 = dma.done [#allocation5], 1024
    $region49: #{mlp_forward.1} parent=1 // pred_fallthru
      _
    %v79 = vld [vmem:[%s0] sm:$0xff]
    %v80 = vpack.c.bf16 %v79, %v79
    %v81 = vld [vmem:[#allocation2] sm:$0xf]
    %v82 = vld [vmem:[#allocation2 + $0x4] sm:$0xf]
    %v83 = vld [vmem:[#allocation2 + $0x8] sm:$0xf]
    %v84 = vld [vmem:[#allocation2 + $0xc] sm:$0xf]
    %v85 = vld [vmem:[#allocation2 + $0x10] sm:$0xf]
    %v86 = vld [vmem:[#allocation2 + $0x14] sm:$0xf]
    %v87 = vld [vmem:[#allocation2 + $0x18] sm:$0xf]
    %v88 = vld [vmem:[#allocation2 + $0x1c] sm:$0xf]
    %v89 = vld [vmem:[#allocation2 + $0x20] sm:$0xf]
    %v90 = vld [vmem:[#allocation2 + $0x24] sm:$0xf]
    %v91 = vld [vmem:[#allocation2 + $0x28] sm:$0xf]
    %v92 = vld [vmem:[#allocation2 + $0x2c] sm:$0xf]
    %v93 = vld [vmem:[#allocation2 + $0x30] sm:$0xf]
    %v94 = vld [vmem:[#allocation2 + $0x34] sm:$0xf]
    %v95 = vld [vmem:[#allocation2 + $0x38] sm:$0xf]
    %v96 = vld [vmem:[#allocation2 + $0x3c] sm:$0xf]
    %v113 = vunpack.c.l.b16 %v81
    %v114 = vunpack.c.l.b16 %v82
    %v115 = vunpack.c.l.b16 %v83
    %v116 = vunpack.c.l.b16 %v84
    %v117 = vunpack.c.l.b16 %v85
    %v118 = vunpack.c.l.b16 %v86
    %v119 = vunpack.c.l.b16 %v87
    %v120 = vunpack.c.l.b16 %v88
    %v121 = vunpack.c.l.b16 %v89
    %v122 = vunpack.c.l.b16 %v90
    %v123 = vunpack.c.l.b16 %v91
    %v124 = vunpack.c.l.b16 %v92
    %v125 = vunpack.c.l.b16 %v93
    %v126 = vunpack.c.l.b16 %v94
    %v127 = vunpack.c.l.b16 %v95
    %v128 = vunpack.c.l.b16 %v96
    %v129 = vpack.c.b16 %v114, %v113
    %v130 = vpack.c.b16 %v116, %v115
    %v131 = vpack.c.b16 %v118, %v117
    %v132 = vpack.c.b16 %v120, %v119
    %v133 = vpack.c.b16 %v122, %v121
    %v134 = vpack.c.b16 %v124, %v123
    %v135 = vpack.c.b16 %v126, %v125
    %v136 = vpack.c.b16 %v128, %v127
    %145 = vmatpush.bf16.msra.mxu0 %v136
    %146 = vmatpush.bf16.msra.mxu0 %v135
    %147 = vmatpush.bf16.msra.mxu0 %v134
    %148 = vmatpush.bf16.msra.mxu0 %v133
    %149 = vmatpush.bf16.msra.mxu0 %v132
    %150 = vmatpush.bf16.msra.mxu0 %v131
    %151 = vmatpush.bf16.msra.mxu0 %v130
    %152 = vmatpush.bf16.msra.mxu0 %v129
    %153 = vmatmul.bf16.gmra.mxu0 %v80
    %v154 = vpop.f32.mrf.mxu0
    %v155 = vadd.f32 0.0, %v154
    %v156 = vpop.f32.mrf.mxu0
    %157 = vdwg.mxu0
    %v158 = vrot.slane %v155, 4
    %v159 = vadd.f32 %v155, %v158
    %v160 = vrot.slane %v159, 2
    %v161 = vadd.f32 %v159, %v160
    %v162 = vrot.slane %v161, 1
    %v163 = vadd.f32 %v161, %v162
    %v164 = vmul.f32 %v163, 0.125
    %v165 = vsub.f32 %v155, %v164
    %v166 = vmul.f32 %v165, %v165
    %v167 = vrot.slane %v166, 4
    %v168 = vadd.f32 %v166, %v167
    %v169 = vrot.slane %v168, 2
    %v170 = vadd.f32 %v168, %v169
    %v171 = vrot.slane %v170, 1
    %v172 = vadd.f32 %v170, %v171
    %v173 = vmul.f32 %v172, 0.125
    %v174 = vld [vmem:[%s2] sm:$0x1]
    %v175 = vadd.f32 %v173, 1e-05
    %v176 = vrsqrt.pop %v175
    %v177 = vmul.f32 %v176, %v175
    %v178 = vmul.f32 %v177, %v176
    %v179 = vmul.f32 0.5, %v178
    %v180 = vsub.f32 1.5, %v179
    %v181 = vmul.f32 %v176, %v180
    %vm182 = vweird.f32 %v175
    %vm183 = vweird.f32 %v176
    %vm184 = vmor %vm182, %vm183
    %v185 = vsel %vm184, %v176, %v181
    %v186 = vmul.f32 %v174, %v185
    %v188 = vperm.slane %v186, 0
    %v190 = vmul.f32 %v165, %v188
    %v191 = vld [vmem:[%s3] sm:$0x1]
    %v193 = vperm.slane %v191, 0
    %v195 = vadd.f32 %v190, %v193
    %v196 = vmax.f32 %v195, 0.0
    %v197 = vpack.c.bf16 %v196, %v196
    %v198 = vld [vmem:[#allocation4] sm:$0xf]
    %v199 = vld [vmem:[#allocation4 + $0x4] sm:$0xf]
    %v200 = vld [vmem:[#allocation4 + $0x8] sm:$0xf]
    %v201 = vld [vmem:[#allocation4 + $0xc] sm:$0xf]
    %v202 = vld [vmem:[#allocation4 + $0x10] sm:$0xf]
    %v203 = vld [vmem:[#allocation4 + $0x14] sm:$0xf]
    %v204 = vld [vmem:[#allocation4 + $0x18] sm:$0xf]
    %v205 = vld [vmem:[#allocation4 + $0x1c] sm:$0xf]
    %v206 = vld [vmem:[#allocation4 + $0x20] sm:$0xf]
    %v207 = vld [vmem:[#allocation4 + $0x24] sm:$0xf]
    %v208 = vld [vmem:[#allocation4 + $0x28] sm:$0xf]
    %v209 = vld [vmem:[#allocation4 + $0x2c] sm:$0xf]
    %v210 = vld [vmem:[#allocation4 + $0x30] sm:$0xf]
    %v211 = vld [vmem:[#allocation4 + $0x34] sm:$0xf]
    %v212 = vld [vmem:[#allocation4 + $0x38] sm:$0xf]
    %v213 = vld [vmem:[#allocation4 + $0x3c] sm:$0xf]
    %v230 = vunpack.c.l.b16 %v198
    %v231 = vunpack.c.l.b16 %v199
    %v232 = vunpack.c.l.b16 %v200
    %v233 = vunpack.c.l.b16 %v201
    %v234 = vunpack.c.l.b16 %v202
    %v235 = vunpack.c.l.b16 %v203
    %v236 = vunpack.c.l.b16 %v204
    %v237 = vunpack.c.l.b16 %v205
    %v238 = vunpack.c.l.b16 %v206
    %v239 = vunpack.c.l.b16 %v207
    %v240 = vunpack.c.l.b16 %v208
    %v241 = vunpack.c.l.b16 %v209
    %v242 = vunpack.c.l.b16 %v210
    %v243 = vunpack.c.l.b16 %v211
    %v244 = vunpack.c.l.b16 %v212
    %v245 = vunpack.c.l.b16 %v213
    %v246 = vpack.c.b16 %v231, %v230
    %v247 = vpack.c.b16 %v233, %v232
    %v248 = vpack.c.b16 %v235, %v234
    %v249 = vpack.c.b16 %v237, %v236
    %v250 = vpack.c.b16 %v239, %v238
    %v251 = vpack.c.b16 %v241, %v240
    %v252 = vpack.c.b16 %v243, %v242
    %v253 = vpack.c.b16 %v245, %v244
    %262 = vmatpush.bf16.msra.mxu0 %v253
    %263 = vmatpush.bf16.msra.mxu0 %v252
    %264 = vmatpush.bf16.msra.mxu0 %v251
    %265 = vmatpush.bf16.msra.mxu0 %v250
    %266 = vmatpush.bf16.msra.mxu0 %v249
    %267 = vmatpush.bf16.msra.mxu0 %v248
    %268 = vmatpush.bf16.msra.mxu0 %v247
    %269 = vmatpush.bf16.msra.mxu0 %v246
    %270 = vmatmul.bf16.gmra.mxu0 %v197
    %v271 = vpop.f32.mrf.mxu0
    %v272 = vadd.f32 0.0, %v271
    %v273 = vpop.f32.mrf.mxu0
    %274 = vdwg.mxu0
    %v275 = vrot.slane %v272, 4
    %v276 = vadd.f32 %v272, %v275
    %v277 = vrot.slane %v276, 2
    %v278 = vadd.f32 %v276, %v277
    %v279 = vrot.slane %v278, 1
    %v280 = vadd.f32 %v278, %v279
    %v281 = vmul.f32 %v280, 0.125
    %v282 = vsub.f32 %v272, %v281
    %v283 = vmul.f32 %v282, %v282
    %v284 = vrot.slane %v283, 4
    %v285 = vadd.f32 %v283, %v284
    %v286 = vrot.slane %v285, 2
    %v287 = vadd.f32 %v285, %v286
    %v288 = vrot.slane %v287, 1
    %v289 = vadd.f32 %v287, %v288
    %v290 = vmul.f32 %v289, 0.125
    %v291 = vld [vmem:[%s5] sm:$0x1]
    %v292 = vadd.f32 %v290, 1e-05
    %v293 = vrsqrt.pop %v292
    %v294 = vmul.f32 %v293, %v292
    %v295 = vmul.f32 %v294, %v293
    %v296 = vmul.f32 0.5, %v295
    %v297 = vsub.f32 1.5, %v296
    %v298 = vmul.f32 %v293, %v297
    %vm299 = vweird.f32 %v292
    %vm300 = vweird.f32 %v293
    %vm301 = vmor %vm299, %vm300
    %v302 = vsel %vm301, %v293, %v298
    %v303 = vmul.f32 %v291, %v302
    %v305 = vperm.slane %v303, 0
    %v307 = vmul.f32 %v282, %v305
    %v308 = vld [vmem:[%s6] sm:$0x1]
    %v310 = vperm.slane %v308, 0
    %v312 = vadd.f32 %v307, %v310
    %v313 = vmax.f32 %v312, 0.0
    %v314 = vpack.c.bf16 %v313, %v313
    %v315 = vld [vmem:[#allocation6] sm:$0xf]
    %v316 = vld [vmem:[#allocation6 + $0x4] sm:$0xf]
    %v317 = vld [vmem:[#allocation6 + $0x8] sm:$0xf]
    %v318 = vld [vmem:[#allocation6 + $0xc] sm:$0xf]
    %v319 = vld [vmem:[#allocation6 + $0x10] sm:$0xf]
    %v320 = vld [vmem:[#allocation6 + $0x14] sm:$0xf]
    %v321 = vld [vmem:[#allocation6 + $0x18] sm:$0xf]
    %v322 = vld [vmem:[#allocation6 + $0x1c] sm:$0xf]
    %v323 = vld [vmem:[#allocation6 + $0x20] sm:$0xf]
    %v324 = vld [vmem:[#allocation6 + $0x24] sm:$0xf]
    %v325 = vld [vmem:[#allocation6 + $0x28] sm:$0xf]
    %v326 = vld [vmem:[#allocation6 + $0x2c] sm:$0xf]
    %v327 = vld [vmem:[#allocation6 + $0x30] sm:$0xf]
    %v328 = vld [vmem:[#allocation6 + $0x34] sm:$0xf]
    %v329 = vld [vmem:[#allocation6 + $0x38] sm:$0xf]
    %v330 = vld [vmem:[#allocation6 + $0x3c] sm:$0xf]
    %v331 = vld [vmem:[%s8] sm:$0x1]
    %v333 = vperm.slane %v331, 0
    %v351 = vunpack.c.l.b16 %v315
    %v352 = vunpack.c.l.b16 %v316
    %v353 = vunpack.c.l.b16 %v317
    %v354 = vunpack.c.l.b16 %v318
    %v355 = vunpack.c.l.b16 %v319
    %v356 = vunpack.c.l.b16 %v320
    %v357 = vunpack.c.l.b16 %v321
    %v358 = vunpack.c.l.b16 %v322
    %v359 = vunpack.c.l.b16 %v323
    %v360 = vunpack.c.l.b16 %v324
    %v361 = vunpack.c.l.b16 %v325
    %v362 = vunpack.c.l.b16 %v326
    %v363 = vunpack.c.l.b16 %v327
    %v364 = vunpack.c.l.b16 %v328
    %v365 = vunpack.c.l.b16 %v329
    %v366 = vunpack.c.l.b16 %v330
    %v367 = vpack.c.b16 %v352, %v351
    %v368 = vpack.c.b16 %v354, %v353
    %v369 = vpack.c.b16 %v356, %v355
    %v370 = vpack.c.b16 %v358, %v357
    %v371 = vpack.c.b16 %v360, %v359
    %v372 = vpack.c.b16 %v362, %v361
    %v373 = vpack.c.b16 %v364, %v363
    %v374 = vpack.c.b16 %v366, %v365
    %383 = vmatpush.bf16.msra.mxu0 %v374
    %384 = vmatpush.bf16.msra.mxu0 %v373
    %385 = vmatpush.bf16.msra.mxu0 %v372
    %386 = vmatpush.bf16.msra.mxu0 %v371
    %387 = vmatpush.bf16.msra.mxu0 %v370
    %388 = vmatpush.bf16.msra.mxu0 %v369
    %389 = vmatpush.bf16.msra.mxu0 %v368
    %390 = vmatpush.bf16.msra.mxu0 %v367
    %391 = vmatmul.bf16.gmra.mxu0 %v314
    %v392 = vpop.f32.mrf.mxu0
    %v393 = vadd.f32 %v333, %v392
    %v394 = vpop.f32.mrf.mxu0
    %395 = vdwg.mxu0
    %396 = vst [vmem:[%s9] sm:$0xff] %v393
    // Predicated region
    $region50: #{mlp_forward.1} parent=1 // pred_check
      _
    $region51: #{mlp_forward.1} parent=1 // pred_check_branch
      %398 = sbr.rel (0) target = $region53
    $region52: #{mlp_forward.1} parent=1 // pred_region
      _
    $region53: #{mlp_forward.1} parent=1 // pred_fallthru
      _
    // Predicated region
    $region54: #{mlp_forward.1} parent=1 // pred_check
      _
    $region55: #{mlp_forward.1} parent=1 // pred_check_branch
      %400 = sbr.rel (0) target = $region57
    $region56: #{mlp_forward.1} parent=1 // pred_region
      _
    $region57: #{mlp_forward.1} parent=1 // pred_fallthru
      _
    %401 = vsyncpa [#allocation3], 1
    %402 = vsyncpa [#allocation5], 1

</llo_original>
